<compile_context>
chip_gen: v5e
topology: v5e:2x2
jax: 0.10.0
libtpu: 0.0.40
codegen_flags: <defaults>
</compile_context>

<pallas_src>
import jax
import jax.numpy as jnp
from jax.experimental import pallas as pl
from jax.experimental.pallas import tpu as pltpu


def merge_model_v_kernel(ids_ref,      # SMEM (B, S) int32      [scalar prefetch]
                         emb_hbm_ref,  # HBM  (VOCAB_IN, D) f32 [memory_space=pl.ANY]
                         wcomb_ref,    # VMEM (D, H) bf16       folded w_lm @ w_mlp1
                         w2_ref,       # VMEM (1, H) f32        mlp layer 2 (row)
                         wfc0_ref,     # VMEM (S, 256) f32      fc0 weight (resident)
                         wfc2_ref,     # VMEM (1, 256) f32      fc2 weight (row)
                         o_ref,        # VMEM (1, 1, 1) f32     this sample's output
                         xbuf,         # VMEM scratch (S, D) f32
                         sem):         # DMA semaphores (S,)
    b = pl.program_id(0)
    S = xbuf.shape[0]

    # --- fused embedding gather: DMA the S token rows of sample b from HBM ----
    copies = []
    for s in range(S):                      # static Python loop, S is small
        tok = ids_ref[b, s]                 # scalar read from SMEM
        cp = pltpu.make_async_copy(
            emb_hbm_ref.at[pl.ds(tok, 1), :],
            xbuf.at[pl.ds(s, 1), :],
            sem.at[s])
        cp.start()
        copies.append(cp)
    for cp in copies:
        cp.wait()

    x = xbuf[...]                           # (S, D) f32

    # mlp layer 1 with the LM head folded in:  h = relu(x @ (w_lm @ w_mlp1))   [MXU, bf16]
    h = jnp.maximum(
        jnp.dot(x.astype(jnp.bfloat16), wcomb_ref[...],
                preferred_element_type=jnp.float32),
        0.0)                                                    # (S, H) f32

    # mlp layer 2 (out_features=1): VPU multiply + lane reduction (no N=1 MXU matmul).
    mlp_col = jnp.sum(h * w2_ref[...], axis=-1, keepdims=True)  # (S, 1)

    # fc0 fused with `.view(B, -1)`, per sample:
    #   fc0(flat)[n] = sum_s mlp[s] * wfc0[s, n]
    # VPU broadcast-mul + sublane-axis sum (XLU), then ReLU.
    y = mlp_col * wfc0_ref[...]                                  # (S, 256)
    z = jnp.maximum(jnp.sum(y, axis=0, keepdims=True), 0.0)      # (1, 256)

    # fc2 (out_features=1): VPU multiply + lane reduction, single store.
    out = jnp.sum(z * wfc2_ref[...], axis=-1, keepdims=True)     # (1, 1)
    o_ref[...] = out.reshape(1, 1, 1)


def merge_model_v_forward(input_ids, embed_table, w_lm, w_mlp1, w_mlp2, w_fc0, w_fc2):
    B, S = input_ids.shape
    D = embed_table.shape[1]
    H = w_mlp1.shape[1]
    N0 = w_fc0.shape[1]

    # One-time frozen-weight algebra (valid: no bias / nonlinearity between the
    # LM head and mlp layer 1):  relu((x @ w_lm) @ w_mlp1) == relu(x @ (w_lm @ w_mlp1)).
    w_combined = (w_lm @ w_mlp1).astype(jnp.bfloat16)            # (D, H) -> bf16 MXU operand
    w2_row = w_mlp2.reshape(1, H).astype(jnp.float32)            # VPU operands stay f32
    wfc2_row = w_fc2.reshape(1, N0).astype(jnp.float32)

    grid_spec = pltpu.PrefetchScalarGridSpec(
        num_scalar_prefetch=1,                                   # input_ids -> SMEM
        grid=(B,),
        in_specs=[
            pl.BlockSpec(memory_space=pl.ANY),                   # embed table stays in HBM
            pl.BlockSpec((D, H), lambda b, ids: (0, 0)),         # folded weight, VMEM-resident
            pl.BlockSpec((1, H), lambda b, ids: (0, 0)),
            pl.BlockSpec((S, N0), lambda b, ids: (0, 0)),        # fc0 weight, no B-tiling
            pl.BlockSpec((1, N0), lambda b, ids: (0, 0)),
        ],
        out_specs=pl.BlockSpec((1, 1, 1), lambda b, ids: (b, 0, 0)),
        scratch_shapes=[
            pltpu.VMEM((S, D), jnp.float32),                     # gathered token rows
            pltpu.SemaphoreType.DMA((S,)),
        ],
    )

    out3 = pl.pallas_call(
        merge_model_v_kernel,
        out_shape=jax.ShapeDtypeStruct((B, 1, 1), jnp.float32),
        grid_spec=grid_spec,
        compiler_params=pltpu.CompilerParams(
            dimension_semantics=("parallel",),                   # shards batch over v7x's 2 TCs
            vmem_limit_bytes=32 * 1024 * 1024),
    )(input_ids, embed_table, w_combined, w2_row, w_fc0, wfc2_row)

    return out3.reshape(B, 1)


def reference_forward(input_ids, embed_table, w_lm, w_mlp1, w_mlp2, w_fc0, w_fc2):
    """Pure-JAX f32 reference mirroring the PyTorch forward (no fold, no bf16)."""
    emb = embed_table[input_ids]                              # (B, S, D)
    logits = jnp.einsum("bsd,dv->bsv", emb, w_lm)             # (B, S, V)
    h = jnp.maximum(jnp.einsum("bsv,vh->bsh", logits, w_mlp1), 0.0)
    mlp_out = jnp.einsum("bsh,ho->bso", h, w_mlp2)            # (B, S, 1)
    flat = mlp_out.reshape(mlp_out.shape[0], -1)              # (B, S)
    z = jnp.maximum(flat @ w_fc0, 0.0)                        # (B, 256)
    return z @ w_fc2                                          # (B, 1)


if __name__ == "__main__":
    # small, deterministic shapes
    B = 2          # batch
    S = 8          # sequence_length
    D = 32         # synthetic hidden size of the "llm"
    V = 64         # vocab size of the logits
    H = 16         # mlp hidden
    VOCAB_IN = 50  # embedding table rows for input_ids

    key = jax.random.PRNGKey(0)
    k_ids, k_emb, k_lm, k_m1, k_m2, k_f0, k_f2 = jax.random.split(key, 7)

    input_ids = jax.random.randint(k_ids, (B, S), 0, VOCAB_IN, dtype=jnp.int32)
    # TODO(synk): attention_mask / labels are only consumed by the frozen llm_model;
    # the synthetic LLM here ignores them.

    embed_table = jax.random.normal(k_emb, (VOCAB_IN, D), dtype=jnp.float32) * 0.02
    w_lm = jax.random.normal(k_lm, (D, V), dtype=jnp.float32) * 0.1
    w_mlp1 = jax.random.normal(k_m1, (V, H), dtype=jnp.float32) * 0.1
    w_mlp2 = jax.random.normal(k_m2, (H, 1), dtype=jnp.float32) * 0.1
    w_fc0 = jax.random.normal(k_f0, (S, 256), dtype=jnp.float32) * 0.1
    w_fc2 = jax.random.normal(k_f2, (256, 1), dtype=jnp.float32) * 0.1

    out = jax.jit(merge_model_v_forward)(
        input_ids, embed_table, w_lm, w_mlp1, w_mlp2, w_fc0, w_fc2)
    out = jax.block_until_ready(out)

    ref = reference_forward(input_ids, embed_table, w_lm, w_mlp1, w_mlp2, w_fc0, w_fc2)
    assert out.shape == (B, 1), out.shape
    # Looser tolerance: the folded (w_lm @ w_mlp1) weight and bf16 MXU operands
    # reassociate / round differently than the pure-f32 unfused reference.
    assert jnp.allclose(out, ref, atol=1e-4, rtol=5e-2), (out, ref)

    print("KERNEL_OK")
</pallas_src>

<mosaic_0001>
module attributes {stable_mosaic.version = 11 : i64} {
  func.func @merge_model_v_kernel(%arg0: i32, %arg1: memref<2x8xi32, #tpu.memory_space<smem>>, %arg2: memref<50x32xf32, #tpu.memory_space<any>>, %arg3: memref<32x16xbf16, #tpu.memory_space<vmem>>, %arg4: memref<1x16xf32, #tpu.memory_space<vmem>>, %arg5: memref<8x256xf32, #tpu.memory_space<vmem>>, %arg6: memref<1x256xf32, #tpu.memory_space<vmem>>, %arg7: memref<1x1x1xf32, #tpu.memory_space<vmem>>, %arg8: memref<8x32xf32, #tpu.memory_space<vmem>>, %arg9: memref<8x!tpu.dma_semaphore, #tpu.memory_space<semaphore_mem>>) attributes {dimension_semantics = [#tpu.dimension_semantics<parallel>], iteration_bounds = array<i64: 2>, scalar_prefetch = 1 : i64, scratch_operands = 2 : i64, tpu.core_type = #tpu.core_type<tc>, window_params = [{}, {pipeline_mode = #tpu.pipeline_mode<synchronous>, transform_indices = @transform_1, window_bounds = array<i64: 32, 16>}, {pipeline_mode = #tpu.pipeline_mode<synchronous>, transform_indices = @transform_2, window_bounds = array<i64: 1, 16>}, {pipeline_mode = #tpu.pipeline_mode<synchronous>, transform_indices = @transform_3, window_bounds = array<i64: 8, 256>}, {pipeline_mode = #tpu.pipeline_mode<synchronous>, transform_indices = @transform_4, window_bounds = array<i64: 1, 256>}, {transform_indices = @transform_5, window_bounds = array<i64: 1, 1, 1>}]} {
    %0 = arith.index_cast %arg0 : i32 to index
    %c0 = arith.constant 0 : index
    %1 = memref.load %arg1[%0, %c0] : memref<2x8xi32, #tpu.memory_space<smem>>
    %c0_i32 = arith.constant 0 : i32
    %c0_i32_0 = arith.constant 0 : i32
    %2 = tpu.memref_slice %arg2[%1, %c0_i32_0] : memref<50x32xf32, #tpu.memory_space<any>> -> memref<1x32xf32, #tpu.memory_space<any>>
    %c0_i32_1 = arith.constant 0 : i32
    %c0_i32_2 = arith.constant 0 : i32
    %3 = tpu.memref_slice %arg8[%c0_i32_1, %c0_i32_2] : memref<8x32xf32, #tpu.memory_space<vmem>> -> memref<1x32xf32, #tpu.memory_space<vmem>>
    %4 = tpu.memref_slice %arg9[%c0_i32] : memref<8x!tpu.dma_semaphore, #tpu.memory_space<semaphore_mem>> -> memref<1x!tpu.dma_semaphore, #tpu.memory_space<semaphore_mem>>
    %5 = tpu.memref_squeeze %4 : memref<1x!tpu.dma_semaphore, #tpu.memory_space<semaphore_mem>> -> memref<!tpu.dma_semaphore, #tpu.memory_space<semaphore_mem>>
    tpu.enqueue_dma source(%2 : memref<1x32xf32, #tpu.memory_space<any>>) target(%3 : memref<1x32xf32, #tpu.memory_space<vmem>>) target_semaphore(%5 : memref<!tpu.dma_semaphore, #tpu.memory_space<semaphore_mem>>)
    %6 = arith.index_cast %arg0 : i32 to index
    %c1 = arith.constant 1 : index
    %7 = memref.load %arg1[%6, %c1] : memref<2x8xi32, #tpu.memory_space<smem>>
    %c1_i32 = arith.constant 1 : i32
    %c0_i32_3 = arith.constant 0 : i32
    %8 = tpu.memref_slice %arg2[%7, %c0_i32_3] : memref<50x32xf32, #tpu.memory_space<any>> -> memref<1x32xf32, #tpu.memory_space<any>>
    %c1_i32_4 = arith.constant 1 : i32
    %c0_i32_5 = arith.constant 0 : i32
    %9 = tpu.memref_slice %arg8[%c1_i32_4, %c0_i32_5] : memref<8x32xf32, #tpu.memory_space<vmem>> -> memref<1x32xf32, #tpu.memory_space<vmem>>
    %10 = tpu.memref_slice %arg9[%c1_i32] : memref<8x!tpu.dma_semaphore, #tpu.memory_space<semaphore_mem>> -> memref<1x!tpu.dma_semaphore, #tpu.memory_space<semaphore_mem>>
    %11 = tpu.memref_squeeze %10 : memref<1x!tpu.dma_semaphore, #tpu.memory_space<semaphore_mem>> -> memref<!tpu.dma_semaphore, #tpu.memory_space<semaphore_mem>>
    tpu.enqueue_dma source(%8 : memref<1x32xf32, #tpu.memory_space<any>>) target(%9 : memref<1x32xf32, #tpu.memory_space<vmem>>) target_semaphore(%11 : memref<!tpu.dma_semaphore, #tpu.memory_space<semaphore_mem>>)
    %12 = arith.index_cast %arg0 : i32 to index
    %c2 = arith.constant 2 : index
    %13 = memref.load %arg1[%12, %c2] : memref<2x8xi32, #tpu.memory_space<smem>>
    %c2_i32 = arith.constant 2 : i32
    %c0_i32_6 = arith.constant 0 : i32
    %14 = tpu.memref_slice %arg2[%13, %c0_i32_6] : memref<50x32xf32, #tpu.memory_space<any>> -> memref<1x32xf32, #tpu.memory_space<any>>
    %c2_i32_7 = arith.constant 2 : i32
    %c0_i32_8 = arith.constant 0 : i32
    %15 = tpu.memref_slice %arg8[%c2_i32_7, %c0_i32_8] : memref<8x32xf32, #tpu.memory_space<vmem>> -> memref<1x32xf32, #tpu.memory_space<vmem>>
    %16 = tpu.memref_slice %arg9[%c2_i32] : memref<8x!tpu.dma_semaphore, #tpu.memory_space<semaphore_mem>> -> memref<1x!tpu.dma_semaphore, #tpu.memory_space<semaphore_mem>>
    %17 = tpu.memref_squeeze %16 : memref<1x!tpu.dma_semaphore, #tpu.memory_space<semaphore_mem>> -> memref<!tpu.dma_semaphore, #tpu.memory_space<semaphore_mem>>
    tpu.enqueue_dma source(%14 : memref<1x32xf32, #tpu.memory_space<any>>) target(%15 : memref<1x32xf32, #tpu.memory_space<vmem>>) target_semaphore(%17 : memref<!tpu.dma_semaphore, #tpu.memory_space<semaphore_mem>>)
    %18 = arith.index_cast %arg0 : i32 to index
    %c3 = arith.constant 3 : index
    %19 = memref.load %arg1[%18, %c3] : memref<2x8xi32, #tpu.memory_space<smem>>
    %c3_i32 = arith.constant 3 : i32
    %c0_i32_9 = arith.constant 0 : i32
    %20 = tpu.memref_slice %arg2[%19, %c0_i32_9] : memref<50x32xf32, #tpu.memory_space<any>> -> memref<1x32xf32, #tpu.memory_space<any>>
    %c3_i32_10 = arith.constant 3 : i32
    %c0_i32_11 = arith.constant 0 : i32
    %21 = tpu.memref_slice %arg8[%c3_i32_10, %c0_i32_11] : memref<8x32xf32, #tpu.memory_space<vmem>> -> memref<1x32xf32, #tpu.memory_space<vmem>>
    %22 = tpu.memref_slice %arg9[%c3_i32] : memref<8x!tpu.dma_semaphore, #tpu.memory_space<semaphore_mem>> -> memref<1x!tpu.dma_semaphore, #tpu.memory_space<semaphore_mem>>
    %23 = tpu.memref_squeeze %22 : memref<1x!tpu.dma_semaphore, #tpu.memory_space<semaphore_mem>> -> memref<!tpu.dma_semaphore, #tpu.memory_space<semaphore_mem>>
    tpu.enqueue_dma source(%20 : memref<1x32xf32, #tpu.memory_space<any>>) target(%21 : memref<1x32xf32, #tpu.memory_space<vmem>>) target_semaphore(%23 : memref<!tpu.dma_semaphore, #tpu.memory_space<semaphore_mem>>)
    %24 = arith.index_cast %arg0 : i32 to index
    %c4 = arith.constant 4 : index
    %25 = memref.load %arg1[%24, %c4] : memref<2x8xi32, #tpu.memory_space<smem>>
    %c4_i32 = arith.constant 4 : i32
    %c0_i32_12 = arith.constant 0 : i32
    %26 = tpu.memref_slice %arg2[%25, %c0_i32_12] : memref<50x32xf32, #tpu.memory_space<any>> -> memref<1x32xf32, #tpu.memory_space<any>>
    %c4_i32_13 = arith.constant 4 : i32
    %c0_i32_14 = arith.constant 0 : i32
    %27 = tpu.memref_slice %arg8[%c4_i32_13, %c0_i32_14] : memref<8x32xf32, #tpu.memory_space<vmem>> -> memref<1x32xf32, #tpu.memory_space<vmem>>
    %28 = tpu.memref_slice %arg9[%c4_i32] : memref<8x!tpu.dma_semaphore, #tpu.memory_space<semaphore_mem>> -> memref<1x!tpu.dma_semaphore, #tpu.memory_space<semaphore_mem>>
    %29 = tpu.memref_squeeze %28 : memref<1x!tpu.dma_semaphore, #tpu.memory_space<semaphore_mem>> -> memref<!tpu.dma_semaphore, #tpu.memory_space<semaphore_mem>>
    tpu.enqueue_dma source(%26 : memref<1x32xf32, #tpu.memory_space<any>>) target(%27 : memref<1x32xf32, #tpu.memory_space<vmem>>) target_semaphore(%29 : memref<!tpu.dma_semaphore, #tpu.memory_space<semaphore_mem>>)
    %30 = arith.index_cast %arg0 : i32 to index
    %c5 = arith.constant 5 : index
    %31 = memref.load %arg1[%30, %c5] : memref<2x8xi32, #tpu.memory_space<smem>>
    %c5_i32 = arith.constant 5 : i32
    %c0_i32_15 = arith.constant 0 : i32
    %32 = tpu.memref_slice %arg2[%31, %c0_i32_15] : memref<50x32xf32, #tpu.memory_space<any>> -> memref<1x32xf32, #tpu.memory_space<any>>
    %c5_i32_16 = arith.constant 5 : i32
    %c0_i32_17 = arith.constant 0 : i32
    %33 = tpu.memref_slice %arg8[%c5_i32_16, %c0_i32_17] : memref<8x32xf32, #tpu.memory_space<vmem>> -> memref<1x32xf32, #tpu.memory_space<vmem>>
    %34 = tpu.memref_slice %arg9[%c5_i32] : memref<8x!tpu.dma_semaphore, #tpu.memory_space<semaphore_mem>> -> memref<1x!tpu.dma_semaphore, #tpu.memory_space<semaphore_mem>>
    %35 = tpu.memref_squeeze %34 : memref<1x!tpu.dma_semaphore, #tpu.memory_space<semaphore_mem>> -> memref<!tpu.dma_semaphore, #tpu.memory_space<semaphore_mem>>
    tpu.enqueue_dma source(%32 : memref<1x32xf32, #tpu.memory_space<any>>) target(%33 : memref<1x32xf32, #tpu.memory_space<vmem>>) target_semaphore(%35 : memref<!tpu.dma_semaphore, #tpu.memory_space<semaphore_mem>>)
    %36 = arith.index_cast %arg0 : i32 to index
    %c6 = arith.constant 6 : index
    %37 = memref.load %arg1[%36, %c6] : memref<2x8xi32, #tpu.memory_space<smem>>
    %c6_i32 = arith.constant 6 : i32
    %c0_i32_18 = arith.constant 0 : i32
    %38 = tpu.memref_slice %arg2[%37, %c0_i32_18] : memref<50x32xf32, #tpu.memory_space<any>> -> memref<1x32xf32, #tpu.memory_space<any>>
    %c6_i32_19 = arith.constant 6 : i32
    %c0_i32_20 = arith.constant 0 : i32
    %39 = tpu.memref_slice %arg8[%c6_i32_19, %c0_i32_20] : memref<8x32xf32, #tpu.memory_space<vmem>> -> memref<1x32xf32, #tpu.memory_space<vmem>>
    %40 = tpu.memref_slice %arg9[%c6_i32] : memref<8x!tpu.dma_semaphore, #tpu.memory_space<semaphore_mem>> -> memref<1x!tpu.dma_semaphore, #tpu.memory_space<semaphore_mem>>
    %41 = tpu.memref_squeeze %40 : memref<1x!tpu.dma_semaphore, #tpu.memory_space<semaphore_mem>> -> memref<!tpu.dma_semaphore, #tpu.memory_space<semaphore_mem>>
    tpu.enqueue_dma source(%38 : memref<1x32xf32, #tpu.memory_space<any>>) target(%39 : memref<1x32xf32, #tpu.memory_space<vmem>>) target_semaphore(%41 : memref<!tpu.dma_semaphore, #tpu.memory_space<semaphore_mem>>)
    %42 = arith.index_cast %arg0 : i32 to index
    %c7 = arith.constant 7 : index
    %43 = memref.load %arg1[%42, %c7] : memref<2x8xi32, #tpu.memory_space<smem>>
    %c7_i32 = arith.constant 7 : i32
    %c0_i32_21 = arith.constant 0 : i32
    %44 = tpu.memref_slice %arg2[%43, %c0_i32_21] : memref<50x32xf32, #tpu.memory_space<any>> -> memref<1x32xf32, #tpu.memory_space<any>>
    %c7_i32_22 = arith.constant 7 : i32
    %c0_i32_23 = arith.constant 0 : i32
    %45 = tpu.memref_slice %arg8[%c7_i32_22, %c0_i32_23] : memref<8x32xf32, #tpu.memory_space<vmem>> -> memref<1x32xf32, #tpu.memory_space<vmem>>
    %46 = tpu.memref_slice %arg9[%c7_i32] : memref<8x!tpu.dma_semaphore, #tpu.memory_space<semaphore_mem>> -> memref<1x!tpu.dma_semaphore, #tpu.memory_space<semaphore_mem>>
    %47 = tpu.memref_squeeze %46 : memref<1x!tpu.dma_semaphore, #tpu.memory_space<semaphore_mem>> -> memref<!tpu.dma_semaphore, #tpu.memory_space<semaphore_mem>>
    tpu.enqueue_dma source(%44 : memref<1x32xf32, #tpu.memory_space<any>>) target(%45 : memref<1x32xf32, #tpu.memory_space<vmem>>) target_semaphore(%47 : memref<!tpu.dma_semaphore, #tpu.memory_space<semaphore_mem>>)
    %c0_i32_24 = arith.constant 0 : i32
    %c0_i32_25 = arith.constant 0 : i32
    %48 = tpu.memref_slice %arg2[%1, %c0_i32_25] : memref<50x32xf32, #tpu.memory_space<any>> -> memref<1x32xf32, #tpu.memory_space<any>>
    %c0_i32_26 = arith.constant 0 : i32
    %c0_i32_27 = arith.constant 0 : i32
    %49 = tpu.memref_slice %arg8[%c0_i32_26, %c0_i32_27] : memref<8x32xf32, #tpu.memory_space<vmem>> -> memref<1x32xf32, #tpu.memory_space<vmem>>
    %50 = tpu.memref_slice %arg9[%c0_i32_24] : memref<8x!tpu.dma_semaphore, #tpu.memory_space<semaphore_mem>> -> memref<1x!tpu.dma_semaphore, #tpu.memory_space<semaphore_mem>>
    %51 = tpu.memref_squeeze %50 : memref<1x!tpu.dma_semaphore, #tpu.memory_space<semaphore_mem>> -> memref<!tpu.dma_semaphore, #tpu.memory_space<semaphore_mem>>
    tpu.wait_dma2 semaphore(%51 : memref<!tpu.dma_semaphore, #tpu.memory_space<semaphore_mem>>) src(%48 : memref<1x32xf32, #tpu.memory_space<any>>) dst(%49 : memref<1x32xf32, #tpu.memory_space<vmem>>)
    %c1_i32_28 = arith.constant 1 : i32
    %c0_i32_29 = arith.constant 0 : i32
    %52 = tpu.memref_slice %arg2[%7, %c0_i32_29] : memref<50x32xf32, #tpu.memory_space<any>> -> memref<1x32xf32, #tpu.memory_space<any>>
    %c1_i32_30 = arith.constant 1 : i32
    %c0_i32_31 = arith.constant 0 : i32
    %53 = tpu.memref_slice %arg8[%c1_i32_30, %c0_i32_31] : memref<8x32xf32, #tpu.memory_space<vmem>> -> memref<1x32xf32, #tpu.memory_space<vmem>>
    %54 = tpu.memref_slice %arg9[%c1_i32_28] : memref<8x!tpu.dma_semaphore, #tpu.memory_space<semaphore_mem>> -> memref<1x!tpu.dma_semaphore, #tpu.memory_space<semaphore_mem>>
    %55 = tpu.memref_squeeze %54 : memref<1x!tpu.dma_semaphore, #tpu.memory_space<semaphore_mem>> -> memref<!tpu.dma_semaphore, #tpu.memory_space<semaphore_mem>>
    tpu.wait_dma2 semaphore(%55 : memref<!tpu.dma_semaphore, #tpu.memory_space<semaphore_mem>>) src(%52 : memref<1x32xf32, #tpu.memory_space<any>>) dst(%53 : memref<1x32xf32, #tpu.memory_space<vmem>>)
    %c2_i32_32 = arith.constant 2 : i32
    %c0_i32_33 = arith.constant 0 : i32
    %56 = tpu.memref_slice %arg2[%13, %c0_i32_33] : memref<50x32xf32, #tpu.memory_space<any>> -> memref<1x32xf32, #tpu.memory_space<any>>
    %c2_i32_34 = arith.constant 2 : i32
    %c0_i32_35 = arith.constant 0 : i32
    %57 = tpu.memref_slice %arg8[%c2_i32_34, %c0_i32_35] : memref<8x32xf32, #tpu.memory_space<vmem>> -> memref<1x32xf32, #tpu.memory_space<vmem>>
    %58 = tpu.memref_slice %arg9[%c2_i32_32] : memref<8x!tpu.dma_semaphore, #tpu.memory_space<semaphore_mem>> -> memref<1x!tpu.dma_semaphore, #tpu.memory_space<semaphore_mem>>
    %59 = tpu.memref_squeeze %58 : memref<1x!tpu.dma_semaphore, #tpu.memory_space<semaphore_mem>> -> memref<!tpu.dma_semaphore, #tpu.memory_space<semaphore_mem>>
    tpu.wait_dma2 semaphore(%59 : memref<!tpu.dma_semaphore, #tpu.memory_space<semaphore_mem>>) src(%56 : memref<1x32xf32, #tpu.memory_space<any>>) dst(%57 : memref<1x32xf32, #tpu.memory_space<vmem>>)
    %c3_i32_36 = arith.constant 3 : i32
    %c0_i32_37 = arith.constant 0 : i32
    %60 = tpu.memref_slice %arg2[%19, %c0_i32_37] : memref<50x32xf32, #tpu.memory_space<any>> -> memref<1x32xf32, #tpu.memory_space<any>>
    %c3_i32_38 = arith.constant 3 : i32
    %c0_i32_39 = arith.constant 0 : i32
    %61 = tpu.memref_slice %arg8[%c3_i32_38, %c0_i32_39] : memref<8x32xf32, #tpu.memory_space<vmem>> -> memref<1x32xf32, #tpu.memory_space<vmem>>
    %62 = tpu.memref_slice %arg9[%c3_i32_36] : memref<8x!tpu.dma_semaphore, #tpu.memory_space<semaphore_mem>> -> memref<1x!tpu.dma_semaphore, #tpu.memory_space<semaphore_mem>>
    %63 = tpu.memref_squeeze %62 : memref<1x!tpu.dma_semaphore, #tpu.memory_space<semaphore_mem>> -> memref<!tpu.dma_semaphore, #tpu.memory_space<semaphore_mem>>
    tpu.wait_dma2 semaphore(%63 : memref<!tpu.dma_semaphore, #tpu.memory_space<semaphore_mem>>) src(%60 : memref<1x32xf32, #tpu.memory_space<any>>) dst(%61 : memref<1x32xf32, #tpu.memory_space<vmem>>)
    %c4_i32_40 = arith.constant 4 : i32
    %c0_i32_41 = arith.constant 0 : i32
    %64 = tpu.memref_slice %arg2[%25, %c0_i32_41] : memref<50x32xf32, #tpu.memory_space<any>> -> memref<1x32xf32, #tpu.memory_space<any>>
    %c4_i32_42 = arith.constant 4 : i32
    %c0_i32_43 = arith.constant 0 : i32
    %65 = tpu.memref_slice %arg8[%c4_i32_42, %c0_i32_43] : memref<8x32xf32, #tpu.memory_space<vmem>> -> memref<1x32xf32, #tpu.memory_space<vmem>>
    %66 = tpu.memref_slice %arg9[%c4_i32_40] : memref<8x!tpu.dma_semaphore, #tpu.memory_space<semaphore_mem>> -> memref<1x!tpu.dma_semaphore, #tpu.memory_space<semaphore_mem>>
    %67 = tpu.memref_squeeze %66 : memref<1x!tpu.dma_semaphore, #tpu.memory_space<semaphore_mem>> -> memref<!tpu.dma_semaphore, #tpu.memory_space<semaphore_mem>>
    tpu.wait_dma2 semaphore(%67 : memref<!tpu.dma_semaphore, #tpu.memory_space<semaphore_mem>>) src(%64 : memref<1x32xf32, #tpu.memory_space<any>>) dst(%65 : memref<1x32xf32, #tpu.memory_space<vmem>>)
    %c5_i32_44 = arith.constant 5 : i32
    %c0_i32_45 = arith.constant 0 : i32
    %68 = tpu.memref_slice %arg2[%31, %c0_i32_45] : memref<50x32xf32, #tpu.memory_space<any>> -> memref<1x32xf32, #tpu.memory_space<any>>
    %c5_i32_46 = arith.constant 5 : i32
    %c0_i32_47 = arith.constant 0 : i32
    %69 = tpu.memref_slice %arg8[%c5_i32_46, %c0_i32_47] : memref<8x32xf32, #tpu.memory_space<vmem>> -> memref<1x32xf32, #tpu.memory_space<vmem>>
    %70 = tpu.memref_slice %arg9[%c5_i32_44] : memref<8x!tpu.dma_semaphore, #tpu.memory_space<semaphore_mem>> -> memref<1x!tpu.dma_semaphore, #tpu.memory_space<semaphore_mem>>
    %71 = tpu.memref_squeeze %70 : memref<1x!tpu.dma_semaphore, #tpu.memory_space<semaphore_mem>> -> memref<!tpu.dma_semaphore, #tpu.memory_space<semaphore_mem>>
    tpu.wait_dma2 semaphore(%71 : memref<!tpu.dma_semaphore, #tpu.memory_space<semaphore_mem>>) src(%68 : memref<1x32xf32, #tpu.memory_space<any>>) dst(%69 : memref<1x32xf32, #tpu.memory_space<vmem>>)
    %c6_i32_48 = arith.constant 6 : i32
    %c0_i32_49 = arith.constant 0 : i32
    %72 = tpu.memref_slice %arg2[%37, %c0_i32_49] : memref<50x32xf32, #tpu.memory_space<any>> -> memref<1x32xf32, #tpu.memory_space<any>>
    %c6_i32_50 = arith.constant 6 : i32
    %c0_i32_51 = arith.constant 0 : i32
    %73 = tpu.memref_slice %arg8[%c6_i32_50, %c0_i32_51] : memref<8x32xf32, #tpu.memory_space<vmem>> -> memref<1x32xf32, #tpu.memory_space<vmem>>
    %74 = tpu.memref_slice %arg9[%c6_i32_48] : memref<8x!tpu.dma_semaphore, #tpu.memory_space<semaphore_mem>> -> memref<1x!tpu.dma_semaphore, #tpu.memory_space<semaphore_mem>>
    %75 = tpu.memref_squeeze %74 : memref<1x!tpu.dma_semaphore, #tpu.memory_space<semaphore_mem>> -> memref<!tpu.dma_semaphore, #tpu.memory_space<semaphore_mem>>
    tpu.wait_dma2 semaphore(%75 : memref<!tpu.dma_semaphore, #tpu.memory_space<semaphore_mem>>) src(%72 : memref<1x32xf32, #tpu.memory_space<any>>) dst(%73 : memref<1x32xf32, #tpu.memory_space<vmem>>)
    %c7_i32_52 = arith.constant 7 : i32
    %c0_i32_53 = arith.constant 0 : i32
    %76 = tpu.memref_slice %arg2[%43, %c0_i32_53] : memref<50x32xf32, #tpu.memory_space<any>> -> memref<1x32xf32, #tpu.memory_space<any>>
    %c7_i32_54 = arith.constant 7 : i32
    %c0_i32_55 = arith.constant 0 : i32
    %77 = tpu.memref_slice %arg8[%c7_i32_54, %c0_i32_55] : memref<8x32xf32, #tpu.memory_space<vmem>> -> memref<1x32xf32, #tpu.memory_space<vmem>>
    %78 = tpu.memref_slice %arg9[%c7_i32_52] : memref<8x!tpu.dma_semaphore, #tpu.memory_space<semaphore_mem>> -> memref<1x!tpu.dma_semaphore, #tpu.memory_space<semaphore_mem>>
    %79 = tpu.memref_squeeze %78 : memref<1x!tpu.dma_semaphore, #tpu.memory_space<semaphore_mem>> -> memref<!tpu.dma_semaphore, #tpu.memory_space<semaphore_mem>>
    tpu.wait_dma2 semaphore(%79 : memref<!tpu.dma_semaphore, #tpu.memory_space<semaphore_mem>>) src(%76 : memref<1x32xf32, #tpu.memory_space<any>>) dst(%77 : memref<1x32xf32, #tpu.memory_space<vmem>>)
    %c0_56 = arith.constant 0 : index
    %c0_57 = arith.constant 0 : index
    %80 = vector.load %arg8[%c0_56, %c0_57] : memref<8x32xf32, #tpu.memory_space<vmem>>, vector<8x32xf32>
    %81 = arith.truncf %80 : vector<8x32xf32> to vector<8x32xbf16>
    %c0_58 = arith.constant 0 : index
    %c0_59 = arith.constant 0 : index
    %82 = vector.load %arg3[%c0_58, %c0_59] : memref<32x16xbf16, #tpu.memory_space<vmem>>, vector<32x16xbf16>
    %cst = arith.constant dense<0.000000e+00> : vector<8x16xf32>
    %83 = tpu.matmul %81, %82, %cst {dimension_numbers = #tpu.dot_dimension_numbers<[1], [0], [0], [1], [0, 0, 1, 1], [], []>} : vector<8x32xbf16>, vector<32x16xbf16>, vector<8x16xf32> -> vector<8x16xf32>
    %cst_60 = arith.constant 0.000000e+00 : f32
    %84 = vector.broadcast %cst_60 : f32 to vector<8x16xf32>
    %85 = arith.maximumf %83, %84 : vector<8x16xf32>
    %c0_61 = arith.constant 0 : index
    %c0_62 = arith.constant 0 : index
    %86 = vector.load %arg4[%c0_61, %c0_62] : memref<1x16xf32, #tpu.memory_space<vmem>>, vector<1x16xf32>
    %87 = vector.broadcast %86 : vector<1x16xf32> to vector<8x16xf32>
    %88 = arith.mulf %85, %87 : vector<8x16xf32>
    %cst_63 = arith.constant dense<0.000000e+00> : vector<8xf32>
    %89 = vector.multi_reduction <add>, %88, %cst_63 [1] : vector<8x16xf32> to vector<8xf32>
    %90 = vector.shape_cast %89 : vector<8xf32> to vector<8x1xf32>
    %c0_64 = arith.constant 0 : index
    %c0_65 = arith.constant 0 : index
    %91 = vector.load %arg5[%c0_64, %c0_65] : memref<8x256xf32, #tpu.memory_space<vmem>>, vector<8x256xf32>
    %92 = vector.broadcast %90 : vector<8x1xf32> to vector<8x256xf32>
    %93 = arith.mulf %92, %91 : vector<8x256xf32>
    %cst_66 = arith.constant dense<0.000000e+00> : vector<256xf32>
    %94 = vector.multi_reduction <add>, %93, %cst_66 [0] : vector<8x256xf32> to vector<256xf32>
    %95 = vector.shape_cast %94 : vector<256xf32> to vector<1x256xf32>
    %cst_67 = arith.constant 0.000000e+00 : f32
    %96 = vector.broadcast %cst_67 : f32 to vector<1x256xf32>
    %97 = arith.maximumf %95, %96 : vector<1x256xf32>
    %c0_68 = arith.constant 0 : index
    %c0_69 = arith.constant 0 : index
    %98 = vector.load %arg6[%c0_68, %c0_69] : memref<1x256xf32, #tpu.memory_space<vmem>>, vector<1x256xf32>
    %99 = arith.mulf %97, %98 : vector<1x256xf32>
    %cst_70 = arith.constant dense<0.000000e+00> : vector<1xf32>
    %100 = vector.multi_reduction <add>, %99, %cst_70 [1] : vector<1x256xf32> to vector<1xf32>
    %101 = vector.shape_cast %100 : vector<1xf32> to vector<1x1xf32>
    %102 = vector.shape_cast %101 : vector<1x1xf32> to vector<1x1x1xf32>
    %c0_71 = arith.constant 0 : index
    %c0_72 = arith.constant 0 : index
    %c0_73 = arith.constant 0 : index
    %103 = vector.load %arg7[%c0_71, %c0_72, %c0_73] : memref<1x1x1xf32, #tpu.memory_space<vmem>>, vector<1x1x1xf32>
    tpu.vector_store %arg7[%c0_71, %c0_72, %c0_73], %102 {strides = array<i32>} : memref<1x1x1xf32, #tpu.memory_space<vmem>>, vector<1x1x1xf32>,
    return
  }
  func.func @transform_1(%arg0: i32, %arg1: memref<2x8xi32, #tpu.memory_space<smem>>) -> (i32, i32) {
    %c0_i32 = arith.constant 0 : i32
    %c0_i32_0 = arith.constant 0 : i32
    %c0_i32_1 = arith.constant 0 : i32
    return %c0_i32, %c0_i32_0 : i32, i32
  }
  func.func @transform_2(%arg0: i32, %arg1: memref<2x8xi32, #tpu.memory_space<smem>>) -> (i32, i32) {
    %c0_i32 = arith.constant 0 : i32
    %c0_i32_0 = arith.constant 0 : i32
    %c0_i32_1 = arith.constant 0 : i32
    return %c0_i32, %c0_i32_0 : i32, i32
  }
  func.func @transform_3(%arg0: i32, %arg1: memref<2x8xi32, #tpu.memory_space<smem>>) -> (i32, i32) {
    %c0_i32 = arith.constant 0 : i32
    %c0_i32_0 = arith.constant 0 : i32
    %c0_i32_1 = arith.constant 0 : i32
    return %c0_i32, %c0_i32_0 : i32, i32
  }
  func.func @transform_4(%arg0: i32, %arg1: memref<2x8xi32, #tpu.memory_space<smem>>) -> (i32, i32) {
    %c0_i32 = arith.constant 0 : i32
    %c0_i32_0 = arith.constant 0 : i32
    %c0_i32_1 = arith.constant 0 : i32
    return %c0_i32, %c0_i32_0 : i32, i32
  }
  func.func @transform_5(%arg0: i32, %arg1: memref<2x8xi32, #tpu.memory_space<smem>>) -> (i32, i32, i32) {
    %c0_i32 = arith.constant 0 : i32
    %c0_i32_0 = arith.constant 0 : i32
    %c0_i32_1 = arith.constant 0 : i32
    return %arg0, %c0_i32, %c0_i32_0 : i32, i32, i32
  }
}

</mosaic_0001>

<llo_original>
// kernel: merge_model_v_forward.1
$region0: #{merge_model_v_forward.1}
  #allocation0 [shape = 'u32[]', space=smem, size = 0x4, offset = 0x4, fixed_abs, tag = 'smem constant byte address 0x4 - core index']
  #allocation1 [shape = 'u32[72,128]{1,0:T(1,128)}', space=vmem, size = 0x9000, scoped, tag = 'internal scratch']
  #allocation2 [shape = 'f32[8,32]{1,0:T(8,128)}', space=vmem, size = 0x1000, scoped, tag = 'scratch operand']
  #allocation3 [shape = 's32[8]{0}', space=sflag, size = 0x20, scoped, tag = 'scratch operand']
  #allocation4 [shape = 's32[1]{0}', space=sflag, size = 0x4, scoped, tag = 'scoped memory for merge_model_v_forward.1']
  #allocation5 [shape = 'u8[1024]{0}', space=smem, size = 0x400, scoped, tag = 'prefetched SMEM operand 0']
  #allocation6 [shape = 's32[]', space=sflag, size = 0x4, offset = 0, fixed_abs, tag = 'sflag constant byte address 0x0 - dummy sync flag']
  #allocation7 [shape = 's32[]', space=sflag, size = 0x4, offset = 0, fixed_abs, tag = 'sflag constant byte address 0x0 - dummy sync flag']
  #allocation8 [shape = 's32[]', space=sflag, size = 0x4, offset = 0, fixed_abs, tag = 'sflag constant byte address 0x0 - dummy sync flag']
  #allocation9 [shape = 's32[]', space=sflag, size = 0x4, offset = 0, fixed_abs, tag = 'sflag constant byte address 0x0 - dummy sync flag']
  #allocation10 [shape = 's32[]', space=sflag, size = 0x4, offset = 0, fixed_abs, tag = 'sflag constant byte address 0x0 - dummy sync flag']
  #allocation11 [shape = 's32[]', space=sflag, size = 0x4, offset = 0, fixed_abs, tag = 'sflag constant byte address 0x0 - dummy sync flag']
  #allocation12 [shape = 's32[]', space=sflag, size = 0x4, offset = 0, fixed_abs, tag = 'sflag constant byte address 0x0 - dummy sync flag']
  #allocation13 [shape = 's32[]', space=sflag, size = 0x4, offset = 0, fixed_abs, tag = 'sflag constant byte address 0x0 - dummy sync flag']
  %s0 = inlined_call_operand.vmem [shape: s32[2,8], index: 0, kind: input, shape index: {}]
  %s1 = inlined_call_operand.vmem [shape: f32[50,32], index: 1, kind: input, shape index: {}]
  %s2 = inlined_call_operand.vmem [shape: bf16[32,16], index: 2, kind: input, shape index: {}]
  %s3 = inlined_call_operand.vmem [shape: f32[1,16], index: 3, kind: input, shape index: {}]
  %s4 = inlined_call_operand.vmem [shape: f32[8,256], index: 4, kind: input, shape index: {}]
  %s5 = inlined_call_operand.vmem [shape: f32[1,256], index: 5, kind: input, shape index: {}]
  %s6 = inlined_call_operand.vmem [shape: f32[2,1,1], index: 6, kind: output, shape index: {}]
  %s7 = sld [smem:[#allocation0]]
  $region289: #{merge_model_v_forward.1} parent=0
    _
  %s9 = ssub.s32 1, %s7
  %s10 = scalar_select 0, %s9, %s7
  %s12 = sshll.u32 %s0, 4
  %s13 = int_to_ptr.vmem [resolvable:$true] %s12
  %15 = dma.vmem_to_smem %s13, 32, [#allocation5], [#allocation4]
  %17 = dma.done [#allocation4], 32
  %18 = sfence
  loop: start=0, step=1, limit=4
  $region2: #{merge_model_v_forward.1} parent=0 // loop_pre_header
    _
  $region3: #{merge_model_v_forward.1} parent=0 // loop_header
    %s20 = sphi 0, %s24
    %p21 = scmp.ge.s32.totalorder %s20, 4
    %s28 = sphi 0, %s28
    %s30 = sphi 0, %s28
    %s31 = sphi 0, %s30
    %s45 = sphi 0, %s31
    %s49 = sphi 0, %s49
    %s51 = sphi 0, %s49
    %s52 = sphi 0, %s51
    %s66 = sphi 0, %s52
    %s70 = sphi 0, %s70
    %s72 = sphi 0, %s70
    %s73 = sphi 0, %s72
    %s87 = sphi 0, %s73
    %s91 = sphi 0, %s91
    %s93 = sphi 0, %s91
    %s94 = sphi 0, %s93
    %s108 = sphi 0, %s94
    %s114 = sphi 0, %s116
    %s117 = sphi 0, %s114
    %s118 = sphi 0, %s117
    %s134 = sphi 0, %s118
  $region4: #{merge_model_v_forward.1} parent=0 // loop_header_branch
    %23 = sbr.rel (%p21) target = $region8
  $region5: #{merge_model_v_forward.1} parent=0 // loop_body
    %s25 = ssub.s32 %s20, 1
    %s26 = ssub.s32 %s20, 2
    %s27 = sadd.s32 %s20, 1
    %s29 = sadd.s32 %s28, 1
    %p32 = scmp.eq.s32.totalorder %s20, 1
    %p33 = scmp.ne.s32.totalorder %s28, %s30
    %p34 = scmp.eq.s32.totalorder %s20, 0
    %p35 = por %p33, %p34
    %p36 = scmp.ne.s32.totalorder %s28, %s30
    %p37 = scmp.eq.s32.totalorder %s25, 1
    %p38 = por %p36, %p37
    %p39 = scmp.ne.s32.totalorder %s30, %s31
    %p40 = scmp.eq.s32.totalorder %s25, 0
    %p41 = por %p39, %p40
    %p42 = scmp.ne.s32.totalorder %s30, %s31
    %p43 = scmp.eq.s32.totalorder %s26, 1
    %p44 = por %p42, %p43
    %p46 = scmp.ne.s32.totalorder %s31, %s45
    %p47 = scmp.eq.s32.totalorder %s26, 0
    %p48 = por %p46, %p47
    %s50 = sadd.s32 %s49, 1
    %p53 = scmp.eq.s32.totalorder %s20, 1
    %p54 = scmp.ne.s32.totalorder %s49, %s51
    %p55 = scmp.eq.s32.totalorder %s20, 0
    %p56 = por %p54, %p55
    %p57 = scmp.ne.s32.totalorder %s49, %s51
    %p58 = scmp.eq.s32.totalorder %s25, 1
    %p59 = por %p57, %p58
    %p60 = scmp.ne.s32.totalorder %s51, %s52
    %p61 = scmp.eq.s32.totalorder %s25, 0
    %p62 = por %p60, %p61
    %p63 = scmp.ne.s32.totalorder %s51, %s52
    %p64 = scmp.eq.s32.totalorder %s26, 1
    %p65 = por %p63, %p64
    %p67 = scmp.ne.s32.totalorder %s52, %s66
    %p68 = scmp.eq.s32.totalorder %s26, 0
    %p69 = por %p67, %p68
    %s71 = sadd.s32 %s70, 1
    %p74 = scmp.eq.s32.totalorder %s20, 1
    %p75 = scmp.ne.s32.totalorder %s70, %s72
    %p76 = scmp.eq.s32.totalorder %s20, 0
    %p77 = por %p75, %p76
    %p78 = scmp.ne.s32.totalorder %s70, %s72
    %p79 = scmp.eq.s32.totalorder %s25, 1
    %p80 = por %p78, %p79
    %p81 = scmp.ne.s32.totalorder %s72, %s73
    %p82 = scmp.eq.s32.totalorder %s25, 0
    %p83 = por %p81, %p82
    %p84 = scmp.ne.s32.totalorder %s72, %s73
    %p85 = scmp.eq.s32.totalorder %s26, 1
    %p86 = por %p84, %p85
    %p88 = scmp.ne.s32.totalorder %s73, %s87
    %p89 = scmp.eq.s32.totalorder %s26, 0
    %p90 = por %p88, %p89
    %s92 = sadd.s32 %s91, 1
    %p95 = scmp.eq.s32.totalorder %s20, 1
    %p96 = scmp.ne.s32.totalorder %s91, %s93
    %p97 = scmp.eq.s32.totalorder %s20, 0
    %p98 = por %p96, %p97
    %p99 = scmp.ne.s32.totalorder %s91, %s93
    %p100 = scmp.eq.s32.totalorder %s25, 1
    %p101 = por %p99, %p100
    %p102 = scmp.ne.s32.totalorder %s93, %s94
    %p103 = scmp.eq.s32.totalorder %s25, 0
    %p104 = por %p102, %p103
    %p105 = scmp.ne.s32.totalorder %s93, %s94
    %p106 = scmp.eq.s32.totalorder %s26, 1
    %p107 = por %p105, %p106
    %p109 = scmp.ne.s32.totalorder %s94, %s108
    %p110 = scmp.eq.s32.totalorder %s26, 0
    %p111 = por %p109, %p110
    %s112 = ssub.s32 %s20, %s27
    %p113 = scmp.eq.s32.totalorder %s112, 0
    %s115 = sadd.s32 %s114, 1
    %s116 = scalar_select %p113, %s114, %s115
    %p119 = pneg %p113
    %p120 = scmp.eq.s32.totalorder %s20, 1
    %p121 = por %p119, %p120
    %p122 = scmp.ne.s32.totalorder %s114, %s117
    %p123 = scmp.eq.s32.totalorder %s20, 0
    %p124 = por %p122, %p123
    %p125 = scmp.ne.s32.totalorder %s114, %s117
    %p126 = scmp.eq.s32.totalorder %s25, 1
    %p127 = por %p125, %p126
    %p128 = scmp.ne.s32.totalorder %s117, %s118
    %p129 = scmp.eq.s32.totalorder %s25, 0
    %p130 = por %p128, %p129
    %p131 = scmp.ne.s32.totalorder %s117, %s118
    %p132 = scmp.eq.s32.totalorder %s26, 1
    %p133 = por %p131, %p132
    %p135 = scmp.ne.s32.totalorder %s118, %s134
    %p136 = scmp.eq.s32.totalorder %s26, 0
    %p137 = por %p135, %p136
    %p138 = scmp.le.s32.totalorder 1, %s20
    %p139 = scmp.lt.s32.totalorder %s20, 3
    %p140 = pnand %p138, %p139
    %p141 = pneg %p140
    // Predicated region
    $region9: #{merge_model_v_forward.1} parent=5 // pred_check
      _
    $region10: #{merge_model_v_forward.1} parent=5 // pred_check_branch
      %143 = sbr.rel (%p140) target = $region12
    $region11: #{merge_model_v_forward.1} parent=5 // pred_region
      %s144 = ssub.s32 %s20, 1
      // Predicated region
      $region13: #{merge_model_v_forward.1} parent=11 // pred_check
        %p145 = pneg %p41
      $region14: #{merge_model_v_forward.1} parent=11 // pred_check_branch
        %147 = sbr.rel (%p145) target = $region16
      $region15: #{merge_model_v_forward.1} parent=11 // pred_region
        _
      $region16: #{merge_model_v_forward.1} parent=11 // pred_fallthru
        _
      // Predicated region
      $region17: #{merge_model_v_forward.1} parent=11 // pred_check
        %p148 = pneg %p62
      $region18: #{merge_model_v_forward.1} parent=11 // pred_check_branch
        %150 = sbr.rel (%p148) target = $region20
      $region19: #{merge_model_v_forward.1} parent=11 // pred_region
        _
      $region20: #{merge_model_v_forward.1} parent=11 // pred_fallthru
        _
      // Predicated region
      $region21: #{merge_model_v_forward.1} parent=11 // pred_check
        %p151 = pneg %p83
      $region22: #{merge_model_v_forward.1} parent=11 // pred_check_branch
        %153 = sbr.rel (%p151) target = $region24
      $region23: #{merge_model_v_forward.1} parent=11 // pred_region
        _
      $region24: #{merge_model_v_forward.1} parent=11 // pred_fallthru
        _
      // Predicated region
      $region25: #{merge_model_v_forward.1} parent=11 // pred_check
        %p154 = pneg %p104
      $region26: #{merge_model_v_forward.1} parent=11 // pred_check_branch
        %156 = sbr.rel (%p154) target = $region28
      $region27: #{merge_model_v_forward.1} parent=11 // pred_region
        _
      $region28: #{merge_model_v_forward.1} parent=11 // pred_fallthru
        _
    $region12: #{merge_model_v_forward.1} parent=5 // pred_fallthru
      _
    %p157 = scmp.lt.s32.totalorder %s20, 2
    // Predicated region
    $region29: #{merge_model_v_forward.1} parent=5 // pred_check
      %p158 = pneg %p157
    $region30: #{merge_model_v_forward.1} parent=5 // pred_check_branch
      %160 = sbr.rel (%p158) target = $region32
    $region31: #{merge_model_v_forward.1} parent=5 // pred_region
      _
    $region32: #{merge_model_v_forward.1} parent=5 // pred_fallthru
      _
    %p161 = scmp.le.s32.totalorder 1, %s20
    %p162 = scmp.lt.s32.totalorder %s20, 3
    %p163 = pnand %p161, %p162
    %p164 = pneg %p163
    // Predicated region
    $region33: #{merge_model_v_forward.1} parent=5 // pred_check
      _
    $region34: #{merge_model_v_forward.1} parent=5 // pred_check_branch
      %166 = sbr.rel (%p163) target = $region36
    $region35: #{merge_model_v_forward.1} parent=5 // pred_region
      %s167 = ssub.s32 %s20, 1
      %p168 = pneg %p41
      %p169 = pneg %p38
      %p170 = pneg %p62
      %p171 = pneg %p59
      %p172 = pneg %p83
      %p173 = pneg %p80
      %p174 = pneg %p104
      %p175 = pneg %p101
      %p176 = pneg %p130
      %p177 = pneg %p127
      %p178 = scmp.lt.s32.totalorder %s25, 1
      %s179 = scalar_select %p178, %s25, 1
      %s180 = scalar_lea.vmem %s6, %s179
      %p181 = scmp.lt.s32.totalorder %s25, 1
      %s182 = scalar_select %p181, %s25, 1
      %s183 = scalar_lea.vmem %s6, %s182
      %s185 = smul.u32 %s25, 128
      %s186 = sld [smem:[#allocation5 + %s185]]
      %s187 = scalar_lea.vmem %s1, %s186
      // Predicated region
      $region37: #{merge_model_v_forward.1} parent=35 // pred_check
        _
      $region38: #{merge_model_v_forward.1} parent=35 // pred_check_branch
        %189 = sbr.rel target = $region40
      $region39: #{merge_model_v_forward.1} parent=35 // pred_region
        // Predicated region
        $region52: #{merge_model_v_forward.1} parent=39 // pred_check
          _
        $region53: #{merge_model_v_forward.1} parent=39 // pred_check_branch
          %205 = sbr.rel (0) target = $region55
        $region54: #{merge_model_v_forward.1} parent=39 // pred_region
          %s207 = ssub.s32 2, 1
          loop: start=0, step=1, limit=1
          $region56: #{merge_model_v_forward.1} parent=54 // loop_pre_header
            _
          $region57: #{merge_model_v_forward.1} parent=54 // loop_header
            %s209 = sphi 0, %s213
            %p210 = scmp.ge.s32.totalorder %s209, 1
            %s214 = sphi %s187, %s187
            %s215 = sphi [#allocation2], [#allocation2]
          $region58: #{merge_model_v_forward.1} parent=54 // loop_header_branch
            %212 = sbr.rel (%p210) target = $region62
          $region59: #{merge_model_v_forward.1} parent=54 // loop_body
            %v216 = vld [vmem:[%s214] sm:%s207]
            %217 = vst [vmem:[%s215] sm:%s207] %v216
          $region60: #{merge_model_v_forward.1} parent=54 // loop_footer
            %s213 = sadd.s32 1, %s209
          $region61: #{merge_model_v_forward.1} parent=54 // loop_footer_branch
            %208 = sbr.rel target = $region57
          $region62: #{merge_model_v_forward.1} parent=54 // loop_exit
            _
        $region55: #{merge_model_v_forward.1} parent=39 // pred_fallthru
          _
      $region40: #{merge_model_v_forward.1} parent=35 // pred_fallthru
        _
      // Predicated region
      $region41: #{merge_model_v_forward.1} parent=35 // pred_check
        _
      $region42: #{merge_model_v_forward.1} parent=35 // pred_check_branch
        %191 = sbr.rel (0) target = $region44
      $region43: #{merge_model_v_forward.1} parent=35 // pred_region
        %s193 = ssub.s32 2, 1
        loop: start=0, step=1, limit=1
        $region45: #{merge_model_v_forward.1} parent=43 // loop_pre_header
          _
        $region46: #{merge_model_v_forward.1} parent=43 // loop_header
          %s195 = sphi 0, %s199
          %p196 = scmp.ge.s32.totalorder %s195, 1
          %s200 = sphi %s187, %s187
          %s201 = sphi [#allocation2], [#allocation2]
        $region47: #{merge_model_v_forward.1} parent=43 // loop_header_branch
          %198 = sbr.rel (%p196) target = $region51
        $region48: #{merge_model_v_forward.1} parent=43 // loop_body
          %v202 = vld [vmem:[%s200] sm:%s193]
          %203 = vst [vmem:[%s201] sm:%s193] %v202
        $region49: #{merge_model_v_forward.1} parent=43 // loop_footer
          %s199 = sadd.s32 1, %s195
        $region50: #{merge_model_v_forward.1} parent=43 // loop_footer_branch
          %194 = sbr.rel target = $region46
        $region51: #{merge_model_v_forward.1} parent=43 // loop_exit
          _
      $region44: #{merge_model_v_forward.1} parent=35 // pred_fallthru
        _
      // Predicated region
      $region63: #{merge_model_v_forward.1} parent=35 // pred_check
        _
      $region64: #{merge_model_v_forward.1} parent=35 // pred_check_branch
        %220 = sbr.rel (0) target = $region66
      $region65: #{merge_model_v_forward.1} parent=35 // pred_region
        %221 = vsyncadd [#allocation3], 16
      $region66: #{merge_model_v_forward.1} parent=35 // pred_fallthru
        _
      %s222 = sadd.s32 %s185, 1
      %s223 = sld [smem:[#allocation5 + %s222]]
      %s224 = scalar_lea.vmem %s1, %s223
      %s225 = scalar_lea.vmem [#allocation2], 1
      %s226 = scalar_lea.sflag [#allocation3], 1
      // Predicated region
      $region67: #{merge_model_v_forward.1} parent=35 // pred_check
        _
      $region68: #{merge_model_v_forward.1} parent=35 // pred_check_branch
        %228 = sbr.rel target = $region70
      $region69: #{merge_model_v_forward.1} parent=35 // pred_region
        // Predicated region
        $region82: #{merge_model_v_forward.1} parent=69 // pred_check
          _
        $region83: #{merge_model_v_forward.1} parent=69 // pred_check_branch
          %244 = sbr.rel (0) target = $region85
        $region84: #{merge_model_v_forward.1} parent=69 // pred_region
          %s246 = ssub.s32 2, 1
          loop: start=0, step=1, limit=1
          $region86: #{merge_model_v_forward.1} parent=84 // loop_pre_header
            _
          $region87: #{merge_model_v_forward.1} parent=84 // loop_header
            %s248 = sphi 0, %s252
            %p249 = scmp.ge.s32.totalorder %s248, 1
            %s253 = sphi %s224, %s224
            %s254 = sphi %s225, %s225
          $region88: #{merge_model_v_forward.1} parent=84 // loop_header_branch
            %251 = sbr.rel (%p249) target = $region92
          $region89: #{merge_model_v_forward.1} parent=84 // loop_body
            %v255 = vld [vmem:[%s253] sm:%s246]
            %256 = vst [vmem:[%s254] sm:%s246] %v255
          $region90: #{merge_model_v_forward.1} parent=84 // loop_footer
            %s252 = sadd.s32 1, %s248
          $region91: #{merge_model_v_forward.1} parent=84 // loop_footer_branch
            %247 = sbr.rel target = $region87
          $region92: #{merge_model_v_forward.1} parent=84 // loop_exit
            _
        $region85: #{merge_model_v_forward.1} parent=69 // pred_fallthru
          _
      $region70: #{merge_model_v_forward.1} parent=35 // pred_fallthru
        _
      // Predicated region
      $region71: #{merge_model_v_forward.1} parent=35 // pred_check
        _
      $region72: #{merge_model_v_forward.1} parent=35 // pred_check_branch
        %230 = sbr.rel (0) target = $region74
      $region73: #{merge_model_v_forward.1} parent=35 // pred_region
        %s232 = ssub.s32 2, 1
        loop: start=0, step=1, limit=1
        $region75: #{merge_model_v_forward.1} parent=73 // loop_pre_header
          _
        $region76: #{merge_model_v_forward.1} parent=73 // loop_header
          %s234 = sphi 0, %s238
          %p235 = scmp.ge.s32.totalorder %s234, 1
          %s239 = sphi %s224, %s224
          %s240 = sphi %s225, %s225
        $region77: #{merge_model_v_forward.1} parent=73 // loop_header_branch
          %237 = sbr.rel (%p235) target = $region81
        $region78: #{merge_model_v_forward.1} parent=73 // loop_body
          %v241 = vld [vmem:[%s239] sm:%s232]
          %242 = vst [vmem:[%s240] sm:%s232] %v241
        $region79: #{merge_model_v_forward.1} parent=73 // loop_footer
          %s238 = sadd.s32 1, %s234
        $region80: #{merge_model_v_forward.1} parent=73 // loop_footer_branch
          %233 = sbr.rel target = $region76
        $region81: #{merge_model_v_forward.1} parent=73 // loop_exit
          _
      $region74: #{merge_model_v_forward.1} parent=35 // pred_fallthru
        _
      // Predicated region
      $region93: #{merge_model_v_forward.1} parent=35 // pred_check
        _
      $region94: #{merge_model_v_forward.1} parent=35 // pred_check_branch
        %259 = sbr.rel (0) target = $region96
      $region95: #{merge_model_v_forward.1} parent=35 // pred_region
        %260 = vsyncadd %s226, 16
      $region96: #{merge_model_v_forward.1} parent=35 // pred_fallthru
        _
      %s261 = sadd.s32 %s185, 2
      %s262 = sld [smem:[#allocation5 + %s261]]
      %s263 = scalar_lea.vmem %s1, %s262
      %s264 = scalar_lea.vmem [#allocation2], 2
      %s265 = scalar_lea.sflag [#allocation3], 2
      // Predicated region
      $region97: #{merge_model_v_forward.1} parent=35 // pred_check
        _
      $region98: #{merge_model_v_forward.1} parent=35 // pred_check_branch
        %267 = sbr.rel target = $region100
      $region99: #{merge_model_v_forward.1} parent=35 // pred_region
        // Predicated region
        $region112: #{merge_model_v_forward.1} parent=99 // pred_check
          _
        $region113: #{merge_model_v_forward.1} parent=99 // pred_check_branch
          %283 = sbr.rel (0) target = $region115
        $region114: #{merge_model_v_forward.1} parent=99 // pred_region
          %s285 = ssub.s32 2, 1
          loop: start=0, step=1, limit=1
          $region116: #{merge_model_v_forward.1} parent=114 // loop_pre_header
            _
          $region117: #{merge_model_v_forward.1} parent=114 // loop_header
            %s287 = sphi 0, %s291
            %p288 = scmp.ge.s32.totalorder %s287, 1
            %s292 = sphi %s263, %s263
            %s293 = sphi %s264, %s264
          $region118: #{merge_model_v_forward.1} parent=114 // loop_header_branch
            %290 = sbr.rel (%p288) target = $region122
          $region119: #{merge_model_v_forward.1} parent=114 // loop_body
            %v294 = vld [vmem:[%s292] sm:%s285]
            %295 = vst [vmem:[%s293] sm:%s285] %v294
          $region120: #{merge_model_v_forward.1} parent=114 // loop_footer
            %s291 = sadd.s32 1, %s287
          $region121: #{merge_model_v_forward.1} parent=114 // loop_footer_branch
            %286 = sbr.rel target = $region117
          $region122: #{merge_model_v_forward.1} parent=114 // loop_exit
            _
        $region115: #{merge_model_v_forward.1} parent=99 // pred_fallthru
          _
      $region100: #{merge_model_v_forward.1} parent=35 // pred_fallthru
        _
      // Predicated region
      $region101: #{merge_model_v_forward.1} parent=35 // pred_check
        _
      $region102: #{merge_model_v_forward.1} parent=35 // pred_check_branch
        %269 = sbr.rel (0) target = $region104
      $region103: #{merge_model_v_forward.1} parent=35 // pred_region
        %s271 = ssub.s32 2, 1
        loop: start=0, step=1, limit=1
        $region105: #{merge_model_v_forward.1} parent=103 // loop_pre_header
          _
        $region106: #{merge_model_v_forward.1} parent=103 // loop_header
          %s273 = sphi 0, %s277
          %p274 = scmp.ge.s32.totalorder %s273, 1
          %s278 = sphi %s263, %s263
          %s279 = sphi %s264, %s264
        $region107: #{merge_model_v_forward.1} parent=103 // loop_header_branch
          %276 = sbr.rel (%p274) target = $region111
        $region108: #{merge_model_v_forward.1} parent=103 // loop_body
          %v280 = vld [vmem:[%s278] sm:%s271]
          %281 = vst [vmem:[%s279] sm:%s271] %v280
        $region109: #{merge_model_v_forward.1} parent=103 // loop_footer
          %s277 = sadd.s32 1, %s273
        $region110: #{merge_model_v_forward.1} parent=103 // loop_footer_branch
          %272 = sbr.rel target = $region106
        $region111: #{merge_model_v_forward.1} parent=103 // loop_exit
          _
      $region104: #{merge_model_v_forward.1} parent=35 // pred_fallthru
        _
      // Predicated region
      $region123: #{merge_model_v_forward.1} parent=35 // pred_check
        _
      $region124: #{merge_model_v_forward.1} parent=35 // pred_check_branch
        %298 = sbr.rel (0) target = $region126
      $region125: #{merge_model_v_forward.1} parent=35 // pred_region
        %299 = vsyncadd %s265, 16
      $region126: #{merge_model_v_forward.1} parent=35 // pred_fallthru
        _
      %s300 = sadd.s32 %s185, 3
      %s301 = sld [smem:[#allocation5 + %s300]]
      %s302 = scalar_lea.vmem %s1, %s301
      %s303 = scalar_lea.vmem [#allocation2], 3
      %s304 = scalar_lea.sflag [#allocation3], 3
      // Predicated region
      $region127: #{merge_model_v_forward.1} parent=35 // pred_check
        _
      $region128: #{merge_model_v_forward.1} parent=35 // pred_check_branch
        %306 = sbr.rel target = $region130
      $region129: #{merge_model_v_forward.1} parent=35 // pred_region
        // Predicated region
        $region142: #{merge_model_v_forward.1} parent=129 // pred_check
          _
        $region143: #{merge_model_v_forward.1} parent=129 // pred_check_branch
          %322 = sbr.rel (0) target = $region145
        $region144: #{merge_model_v_forward.1} parent=129 // pred_region
          %s324 = ssub.s32 2, 1
          loop: start=0, step=1, limit=1
          $region146: #{merge_model_v_forward.1} parent=144 // loop_pre_header
            _
          $region147: #{merge_model_v_forward.1} parent=144 // loop_header
            %s326 = sphi 0, %s330
            %p327 = scmp.ge.s32.totalorder %s326, 1
            %s331 = sphi %s302, %s302
            %s332 = sphi %s303, %s303
          $region148: #{merge_model_v_forward.1} parent=144 // loop_header_branch
            %329 = sbr.rel (%p327) target = $region152
          $region149: #{merge_model_v_forward.1} parent=144 // loop_body
            %v333 = vld [vmem:[%s331] sm:%s324]
            %334 = vst [vmem:[%s332] sm:%s324] %v333
          $region150: #{merge_model_v_forward.1} parent=144 // loop_footer
            %s330 = sadd.s32 1, %s326
          $region151: #{merge_model_v_forward.1} parent=144 // loop_footer_branch
            %325 = sbr.rel target = $region147
          $region152: #{merge_model_v_forward.1} parent=144 // loop_exit
            _
        $region145: #{merge_model_v_forward.1} parent=129 // pred_fallthru
          _
      $region130: #{merge_model_v_forward.1} parent=35 // pred_fallthru
        _
      // Predicated region
      $region131: #{merge_model_v_forward.1} parent=35 // pred_check
        _
      $region132: #{merge_model_v_forward.1} parent=35 // pred_check_branch
        %308 = sbr.rel (0) target = $region134
      $region133: #{merge_model_v_forward.1} parent=35 // pred_region
        %s310 = ssub.s32 2, 1
        loop: start=0, step=1, limit=1
        $region135: #{merge_model_v_forward.1} parent=133 // loop_pre_header
          _
        $region136: #{merge_model_v_forward.1} parent=133 // loop_header
          %s312 = sphi 0, %s316
          %p313 = scmp.ge.s32.totalorder %s312, 1
          %s317 = sphi %s302, %s302
          %s318 = sphi %s303, %s303
        $region137: #{merge_model_v_forward.1} parent=133 // loop_header_branch
          %315 = sbr.rel (%p313) target = $region141
        $region138: #{merge_model_v_forward.1} parent=133 // loop_body
          %v319 = vld [vmem:[%s317] sm:%s310]
          %320 = vst [vmem:[%s318] sm:%s310] %v319
        $region139: #{merge_model_v_forward.1} parent=133 // loop_footer
          %s316 = sadd.s32 1, %s312
        $region140: #{merge_model_v_forward.1} parent=133 // loop_footer_branch
          %311 = sbr.rel target = $region136
        $region141: #{merge_model_v_forward.1} parent=133 // loop_exit
          _
      $region134: #{merge_model_v_forward.1} parent=35 // pred_fallthru
        _
      // Predicated region
      $region153: #{merge_model_v_forward.1} parent=35 // pred_check
        _
      $region154: #{merge_model_v_forward.1} parent=35 // pred_check_branch
        %337 = sbr.rel (0) target = $region156
      $region155: #{merge_model_v_forward.1} parent=35 // pred_region
        %338 = vsyncadd %s304, 16
      $region156: #{merge_model_v_forward.1} parent=35 // pred_fallthru
        _
      %s339 = sadd.s32 %s185, 4
      %s340 = sld [smem:[#allocation5 + %s339]]
      %s341 = scalar_lea.vmem %s1, %s340
      %s342 = scalar_lea.vmem [#allocation2], 4
      %s343 = scalar_lea.sflag [#allocation3], 4
      // Predicated region
      $region157: #{merge_model_v_forward.1} parent=35 // pred_check
        _
      $region158: #{merge_model_v_forward.1} parent=35 // pred_check_branch
        %345 = sbr.rel target = $region160
      $region159: #{merge_model_v_forward.1} parent=35 // pred_region
        // Predicated region
        $region172: #{merge_model_v_forward.1} parent=159 // pred_check
          _
        $region173: #{merge_model_v_forward.1} parent=159 // pred_check_branch
          %361 = sbr.rel (0) target = $region175
        $region174: #{merge_model_v_forward.1} parent=159 // pred_region
          %s363 = ssub.s32 2, 1
          loop: start=0, step=1, limit=1
          $region176: #{merge_model_v_forward.1} parent=174 // loop_pre_header
            _
          $region177: #{merge_model_v_forward.1} parent=174 // loop_header
            %s365 = sphi 0, %s369
            %p366 = scmp.ge.s32.totalorder %s365, 1
            %s370 = sphi %s341, %s341
            %s371 = sphi %s342, %s342
          $region178: #{merge_model_v_forward.1} parent=174 // loop_header_branch
            %368 = sbr.rel (%p366) target = $region182
          $region179: #{merge_model_v_forward.1} parent=174 // loop_body
            %v372 = vld [vmem:[%s370] sm:%s363]
            %373 = vst [vmem:[%s371] sm:%s363] %v372
          $region180: #{merge_model_v_forward.1} parent=174 // loop_footer
            %s369 = sadd.s32 1, %s365
          $region181: #{merge_model_v_forward.1} parent=174 // loop_footer_branch
            %364 = sbr.rel target = $region177
          $region182: #{merge_model_v_forward.1} parent=174 // loop_exit
            _
        $region175: #{merge_model_v_forward.1} parent=159 // pred_fallthru
          _
      $region160: #{merge_model_v_forward.1} parent=35 // pred_fallthru
        _
      // Predicated region
      $region161: #{merge_model_v_forward.1} parent=35 // pred_check
        _
      $region162: #{merge_model_v_forward.1} parent=35 // pred_check_branch
        %347 = sbr.rel (0) target = $region164
      $region163: #{merge_model_v_forward.1} parent=35 // pred_region
        %s349 = ssub.s32 2, 1
        loop: start=0, step=1, limit=1
        $region165: #{merge_model_v_forward.1} parent=163 // loop_pre_header
          _
        $region166: #{merge_model_v_forward.1} parent=163 // loop_header
          %s351 = sphi 0, %s355
          %p352 = scmp.ge.s32.totalorder %s351, 1
          %s356 = sphi %s341, %s341
          %s357 = sphi %s342, %s342
        $region167: #{merge_model_v_forward.1} parent=163 // loop_header_branch
          %354 = sbr.rel (%p352) target = $region171
        $region168: #{merge_model_v_forward.1} parent=163 // loop_body
          %v358 = vld [vmem:[%s356] sm:%s349]
          %359 = vst [vmem:[%s357] sm:%s349] %v358
        $region169: #{merge_model_v_forward.1} parent=163 // loop_footer
          %s355 = sadd.s32 1, %s351
        $region170: #{merge_model_v_forward.1} parent=163 // loop_footer_branch
          %350 = sbr.rel target = $region166
        $region171: #{merge_model_v_forward.1} parent=163 // loop_exit
          _
      $region164: #{merge_model_v_forward.1} parent=35 // pred_fallthru
        _
      // Predicated region
      $region183: #{merge_model_v_forward.1} parent=35 // pred_check
        _
      $region184: #{merge_model_v_forward.1} parent=35 // pred_check_branch
        %376 = sbr.rel (0) target = $region186
      $region185: #{merge_model_v_forward.1} parent=35 // pred_region
        %377 = vsyncadd %s343, 16
      $region186: #{merge_model_v_forward.1} parent=35 // pred_fallthru
        _
      %s378 = sadd.s32 %s185, 5
      %s379 = sld [smem:[#allocation5 + %s378]]
      %s380 = scalar_lea.vmem %s1, %s379
      %s381 = scalar_lea.vmem [#allocation2], 5
      %s382 = scalar_lea.sflag [#allocation3], 5
      // Predicated region
      $region187: #{merge_model_v_forward.1} parent=35 // pred_check
        _
      $region188: #{merge_model_v_forward.1} parent=35 // pred_check_branch
        %384 = sbr.rel target = $region190
      $region189: #{merge_model_v_forward.1} parent=35 // pred_region
        // Predicated region
        $region202: #{merge_model_v_forward.1} parent=189 // pred_check
          _
        $region203: #{merge_model_v_forward.1} parent=189 // pred_check_branch
          %400 = sbr.rel (0) target = $region205
        $region204: #{merge_model_v_forward.1} parent=189 // pred_region
          %s402 = ssub.s32 2, 1
          loop: start=0, step=1, limit=1
          $region206: #{merge_model_v_forward.1} parent=204 // loop_pre_header
            _
          $region207: #{merge_model_v_forward.1} parent=204 // loop_header
            %s404 = sphi 0, %s408
            %p405 = scmp.ge.s32.totalorder %s404, 1
            %s409 = sphi %s380, %s380
            %s410 = sphi %s381, %s381
          $region208: #{merge_model_v_forward.1} parent=204 // loop_header_branch
            %407 = sbr.rel (%p405) target = $region212
          $region209: #{merge_model_v_forward.1} parent=204 // loop_body
            %v411 = vld [vmem:[%s409] sm:%s402]
            %412 = vst [vmem:[%s410] sm:%s402] %v411
          $region210: #{merge_model_v_forward.1} parent=204 // loop_footer
            %s408 = sadd.s32 1, %s404
          $region211: #{merge_model_v_forward.1} parent=204 // loop_footer_branch
            %403 = sbr.rel target = $region207
          $region212: #{merge_model_v_forward.1} parent=204 // loop_exit
            _
        $region205: #{merge_model_v_forward.1} parent=189 // pred_fallthru
          _
      $region190: #{merge_model_v_forward.1} parent=35 // pred_fallthru
        _
      // Predicated region
      $region191: #{merge_model_v_forward.1} parent=35 // pred_check
        _
      $region192: #{merge_model_v_forward.1} parent=35 // pred_check_branch
        %386 = sbr.rel (0) target = $region194
      $region193: #{merge_model_v_forward.1} parent=35 // pred_region
        %s388 = ssub.s32 2, 1
        loop: start=0, step=1, limit=1
        $region195: #{merge_model_v_forward.1} parent=193 // loop_pre_header
          _
        $region196: #{merge_model_v_forward.1} parent=193 // loop_header
          %s390 = sphi 0, %s394
          %p391 = scmp.ge.s32.totalorder %s390, 1
          %s395 = sphi %s380, %s380
          %s396 = sphi %s381, %s381
        $region197: #{merge_model_v_forward.1} parent=193 // loop_header_branch
          %393 = sbr.rel (%p391) target = $region201
        $region198: #{merge_model_v_forward.1} parent=193 // loop_body
          %v397 = vld [vmem:[%s395] sm:%s388]
          %398 = vst [vmem:[%s396] sm:%s388] %v397
        $region199: #{merge_model_v_forward.1} parent=193 // loop_footer
          %s394 = sadd.s32 1, %s390
        $region200: #{merge_model_v_forward.1} parent=193 // loop_footer_branch
          %389 = sbr.rel target = $region196
        $region201: #{merge_model_v_forward.1} parent=193 // loop_exit
          _
      $region194: #{merge_model_v_forward.1} parent=35 // pred_fallthru
        _
      // Predicated region
      $region213: #{merge_model_v_forward.1} parent=35 // pred_check
        _
      $region214: #{merge_model_v_forward.1} parent=35 // pred_check_branch
        %415 = sbr.rel (0) target = $region216
      $region215: #{merge_model_v_forward.1} parent=35 // pred_region
        %416 = vsyncadd %s382, 16
      $region216: #{merge_model_v_forward.1} parent=35 // pred_fallthru
        _
      %s417 = sadd.s32 %s185, 6
      %s418 = sld [smem:[#allocation5 + %s417]]
      %s419 = scalar_lea.vmem %s1, %s418
      %s420 = scalar_lea.vmem [#allocation2], 6
      %s421 = scalar_lea.sflag [#allocation3], 6
      // Predicated region
      $region217: #{merge_model_v_forward.1} parent=35 // pred_check
        _
      $region218: #{merge_model_v_forward.1} parent=35 // pred_check_branch
        %423 = sbr.rel target = $region220
      $region219: #{merge_model_v_forward.1} parent=35 // pred_region
        // Predicated region
        $region232: #{merge_model_v_forward.1} parent=219 // pred_check
          _
        $region233: #{merge_model_v_forward.1} parent=219 // pred_check_branch
          %439 = sbr.rel (0) target = $region235
        $region234: #{merge_model_v_forward.1} parent=219 // pred_region
          %s441 = ssub.s32 2, 1
          loop: start=0, step=1, limit=1
          $region236: #{merge_model_v_forward.1} parent=234 // loop_pre_header
            _
          $region237: #{merge_model_v_forward.1} parent=234 // loop_header
            %s443 = sphi 0, %s447
            %p444 = scmp.ge.s32.totalorder %s443, 1
            %s448 = sphi %s419, %s419
            %s449 = sphi %s420, %s420
          $region238: #{merge_model_v_forward.1} parent=234 // loop_header_branch
            %446 = sbr.rel (%p444) target = $region242
          $region239: #{merge_model_v_forward.1} parent=234 // loop_body
            %v450 = vld [vmem:[%s448] sm:%s441]
            %451 = vst [vmem:[%s449] sm:%s441] %v450
          $region240: #{merge_model_v_forward.1} parent=234 // loop_footer
            %s447 = sadd.s32 1, %s443
          $region241: #{merge_model_v_forward.1} parent=234 // loop_footer_branch
            %442 = sbr.rel target = $region237
          $region242: #{merge_model_v_forward.1} parent=234 // loop_exit
            _
        $region235: #{merge_model_v_forward.1} parent=219 // pred_fallthru
          _
      $region220: #{merge_model_v_forward.1} parent=35 // pred_fallthru
        _
      // Predicated region
      $region221: #{merge_model_v_forward.1} parent=35 // pred_check
        _
      $region222: #{merge_model_v_forward.1} parent=35 // pred_check_branch
        %425 = sbr.rel (0) target = $region224
      $region223: #{merge_model_v_forward.1} parent=35 // pred_region
        %s427 = ssub.s32 2, 1
        loop: start=0, step=1, limit=1
        $region225: #{merge_model_v_forward.1} parent=223 // loop_pre_header
          _
        $region226: #{merge_model_v_forward.1} parent=223 // loop_header
          %s429 = sphi 0, %s433
          %p430 = scmp.ge.s32.totalorder %s429, 1
          %s434 = sphi %s419, %s419
          %s435 = sphi %s420, %s420
        $region227: #{merge_model_v_forward.1} parent=223 // loop_header_branch
          %432 = sbr.rel (%p430) target = $region231
        $region228: #{merge_model_v_forward.1} parent=223 // loop_body
          %v436 = vld [vmem:[%s434] sm:%s427]
          %437 = vst [vmem:[%s435] sm:%s427] %v436
        $region229: #{merge_model_v_forward.1} parent=223 // loop_footer
          %s433 = sadd.s32 1, %s429
        $region230: #{merge_model_v_forward.1} parent=223 // loop_footer_branch
          %428 = sbr.rel target = $region226
        $region231: #{merge_model_v_forward.1} parent=223 // loop_exit
          _
      $region224: #{merge_model_v_forward.1} parent=35 // pred_fallthru
        _
      // Predicated region
      $region243: #{merge_model_v_forward.1} parent=35 // pred_check
        _
      $region244: #{merge_model_v_forward.1} parent=35 // pred_check_branch
        %454 = sbr.rel (0) target = $region246
      $region245: #{merge_model_v_forward.1} parent=35 // pred_region
        %455 = vsyncadd %s421, 16
      $region246: #{merge_model_v_forward.1} parent=35 // pred_fallthru
        _
      %s456 = sadd.s32 %s185, 7
      %s457 = sld [smem:[#allocation5 + %s456]]
      %s458 = scalar_lea.vmem %s1, %s457
      %s459 = scalar_lea.vmem [#allocation2], 7
      %s460 = scalar_lea.sflag [#allocation3], 7
      // Predicated region
      $region247: #{merge_model_v_forward.1} parent=35 // pred_check
        _
      $region248: #{merge_model_v_forward.1} parent=35 // pred_check_branch
        %462 = sbr.rel target = $region250
      $region249: #{merge_model_v_forward.1} parent=35 // pred_region
        // Predicated region
        $region262: #{merge_model_v_forward.1} parent=249 // pred_check
          _
        $region263: #{merge_model_v_forward.1} parent=249 // pred_check_branch
          %478 = sbr.rel (0) target = $region265
        $region264: #{merge_model_v_forward.1} parent=249 // pred_region
          %s480 = ssub.s32 2, 1
          loop: start=0, step=1, limit=1
          $region266: #{merge_model_v_forward.1} parent=264 // loop_pre_header
            _
          $region267: #{merge_model_v_forward.1} parent=264 // loop_header
            %s482 = sphi 0, %s486
            %p483 = scmp.ge.s32.totalorder %s482, 1
            %s487 = sphi %s458, %s458
            %s488 = sphi %s459, %s459
          $region268: #{merge_model_v_forward.1} parent=264 // loop_header_branch
            %485 = sbr.rel (%p483) target = $region272
          $region269: #{merge_model_v_forward.1} parent=264 // loop_body
            %v489 = vld [vmem:[%s487] sm:%s480]
            %490 = vst [vmem:[%s488] sm:%s480] %v489
          $region270: #{merge_model_v_forward.1} parent=264 // loop_footer
            %s486 = sadd.s32 1, %s482
          $region271: #{merge_model_v_forward.1} parent=264 // loop_footer_branch
            %481 = sbr.rel target = $region267
          $region272: #{merge_model_v_forward.1} parent=264 // loop_exit
            _
        $region265: #{merge_model_v_forward.1} parent=249 // pred_fallthru
          _
      $region250: #{merge_model_v_forward.1} parent=35 // pred_fallthru
        _
      // Predicated region
      $region251: #{merge_model_v_forward.1} parent=35 // pred_check
        _
      $region252: #{merge_model_v_forward.1} parent=35 // pred_check_branch
        %464 = sbr.rel (0) target = $region254
      $region253: #{merge_model_v_forward.1} parent=35 // pred_region
        %s466 = ssub.s32 2, 1
        loop: start=0, step=1, limit=1
        $region255: #{merge_model_v_forward.1} parent=253 // loop_pre_header
          _
        $region256: #{merge_model_v_forward.1} parent=253 // loop_header
          %s468 = sphi 0, %s472
          %p469 = scmp.ge.s32.totalorder %s468, 1
          %s473 = sphi %s458, %s458
          %s474 = sphi %s459, %s459
        $region257: #{merge_model_v_forward.1} parent=253 // loop_header_branch
          %471 = sbr.rel (%p469) target = $region261
        $region258: #{merge_model_v_forward.1} parent=253 // loop_body
          %v475 = vld [vmem:[%s473] sm:%s466]
          %476 = vst [vmem:[%s474] sm:%s466] %v475
        $region259: #{merge_model_v_forward.1} parent=253 // loop_footer
          %s472 = sadd.s32 1, %s468
        $region260: #{merge_model_v_forward.1} parent=253 // loop_footer_branch
          %467 = sbr.rel target = $region256
        $region261: #{merge_model_v_forward.1} parent=253 // loop_exit
          _
      $region254: #{merge_model_v_forward.1} parent=35 // pred_fallthru
        _
      // Predicated region
      $region273: #{merge_model_v_forward.1} parent=35 // pred_check
        _
      $region274: #{merge_model_v_forward.1} parent=35 // pred_check_branch
        %493 = sbr.rel (0) target = $region276
      $region275: #{merge_model_v_forward.1} parent=35 // pred_region
        %494 = vsyncadd %s460, 16
      $region276: #{merge_model_v_forward.1} parent=35 // pred_fallthru
        _
      %s495 = smul.u32 1, 1
      %s496 = sshll.u32 %s495, 4
      %497 = dma.done [#allocation3], %s496
      %s498 = sshll.u32 %s495, 4
      %499 = dma.done %s226, %s498
      %s500 = sshll.u32 %s495, 4
      %501 = dma.done %s265, %s500
      %s502 = sshll.u32 %s495, 4
      %503 = dma.done %s304, %s502
      %s504 = sshll.u32 %s495, 4
      %505 = dma.done %s343, %s504
      %s506 = sshll.u32 %s495, 4
      %507 = dma.done %s382, %s506
      %s508 = sshll.u32 %s495, 4
      %509 = dma.done %s421, %s508
      %s510 = sshll.u32 %s495, 4
      %511 = dma.done %s460, %s510
      %v512 = vld [vmem:[#allocation2] sm:$0xff]
      %v513 = vpack.c.bf16 %v512, %v512
      %v514 = vld [vmem:[%s2] sm:$0xf]
      %v515 = vld [vmem:[%s2 + $0x4] sm:$0xf]
      %v516 = vld [vmem:[%s2 + $0x8] sm:$0xf]
      %v517 = vld [vmem:[%s2 + $0xc] sm:$0xf]
      %v522 = vunpack.c.l.b16 %v514
      %v523 = vunpack.c.l.b16 %v515
      %v524 = vunpack.c.l.b16 %v516
      %v525 = vunpack.c.l.b16 %v517
      %v526 = vpack.c.b16 %v523, %v522
      %v527 = vpack.c.b16 %v525, %v524
      %vm530 = vcmask 261120
      %v532 = vsel %vm530, %v513, 0
      %534 = vmatpush.bf16.msra.mxu0 0
      %535 = vmatpush.bf16.msra.mxu0 0
      %536 = vmatpush.bf16.msra.mxu0 0
      %537 = vmatpush.bf16.msra.mxu0 0
      %538 = vmatpush.bf16.msra.mxu0 0
      %539 = vmatpush.bf16.msra.mxu0 0
      %540 = vmatpush.bf16.msra.mxu0 %v527
      %541 = vmatpush.bf16.msra.mxu0 %v526
      %542 = vmatmul.bf16.gmra.mxu0 %v532
      %v543 = vpop.f32.mrf.mxu0
      %v544 = vadd.f32 0.0, %v543
      %v545 = vpop.f32.mrf.mxu0
      %546 = vdwg.mxu0
      %v547 = vmax.f32 %v544, 0.0
      %v548 = vld [vmem:[%s3] sm:$0x1]
      %v550 = vperm.slane %v548, 0
      %v552 = vmul.f32 %v547, %v550
      %vm553 = vcmask 130048
      %v554 = vsel %vm553, %v552, 0.0
      %555 = vadd.xlane.f32.xlu0 %v554
      %v556 = vpop.xlane.xlu0 %555
      %v557 = vld [vmem:[%s4] sm:$0xff]
      %v558 = vld [vmem:[%s4 + $0x8] sm:$0xff]
      %v559 = vmul.f32 %v556, %v557
      %v560 = vmul.f32 %v556, %v558
      %v561 = vrot.slane %v559, 4
      %v562 = vadd.f32 %v559, %v561
      %v563 = vrot.slane %v562, 2
      %v564 = vadd.f32 %v562, %v563
      %v565 = vrot.slane %v564, 1
      %v566 = vadd.f32 %v564, %v565
      %v567 = vrot.slane %v560, 4
      %v568 = vadd.f32 %v560, %v567
      %v569 = vrot.slane %v568, 2
      %v570 = vadd.f32 %v568, %v569
      %v571 = vrot.slane %v570, 1
      %v572 = vadd.f32 %v570, %v571
      %v573 = vmax.f32 %v566, 0.0
      %v574 = vmax.f32 %v572, 0.0
      %v575 = vld [vmem:[%s5] sm:$0x3]
      %v577 = vperm.slane %v575, 0
      %v578 = vperm.slane %v575, 1
      %v581 = vmul.f32 %v573, %v577
      %v582 = vmul.f32 %v574, %v578
      %vm583 = vcmask 1040384
      %v584 = vsel %vm583, %v581, 0.0
      %v585 = vsel %vm583, %v582, 0.0
      %v586 = vadd.f32 %v584, %v585
      %587 = vadd.xlane.f32.xlu0 %v586
      %v588 = vpop.xlane.xlu0 %587
      %vm589 = vcmask 0
      %590 = vst.msk [vmem:[%s183] sm:$0x1] %vm589, %v588
      %p591 = scmp.lt.s32.totalorder %s25, 1
      %s592 = scalar_select %p591, %s25, 1
      %s593 = scalar_lea.vmem %s6, %s592
      // Predicated region
      $region277: #{merge_model_v_forward.1} parent=35 // pred_check
        %p594 = pneg %p127
      $region278: #{merge_model_v_forward.1} parent=35 // pred_check_branch
        %596 = sbr.rel (%p594) target = $region280
      $region279: #{merge_model_v_forward.1} parent=35 // pred_region
        _
      $region280: #{merge_model_v_forward.1} parent=35 // pred_fallthru
        _
    $region36: #{merge_model_v_forward.1} parent=5 // pred_fallthru
      _
    %p597 = scmp.le.s32.totalorder 2, %s20
    // Predicated region
    $region281: #{merge_model_v_forward.1} parent=5 // pred_check
      %p598 = pneg %p597
    $region282: #{merge_model_v_forward.1} parent=5 // pred_check_branch
      %600 = sbr.rel (%p598) target = $region284
    $region283: #{merge_model_v_forward.1} parent=5 // pred_region
      %s601 = ssub.s32 %s20, 2
      // Predicated region
      $region285: #{merge_model_v_forward.1} parent=283 // pred_check
        %p602 = pneg %p133
      $region286: #{merge_model_v_forward.1} parent=283 // pred_check_branch
        %604 = sbr.rel (%p602) target = $region288
      $region287: #{merge_model_v_forward.1} parent=283 // pred_region
        %p605 = scmp.lt.s32.totalorder %s26, 1
        %s606 = scalar_select %p605, %s26, 1
        %s607 = scalar_lea.vmem %s6, %s606
      $region288: #{merge_model_v_forward.1} parent=283 // pred_fallthru
        _
    $region284: #{merge_model_v_forward.1} parent=5 // pred_fallthru
      _
  $region6: #{merge_model_v_forward.1} parent=0 // loop_footer
    %s24 = sadd.s32 1, %s20
  $region7: #{merge_model_v_forward.1} parent=0 // loop_footer_branch
    %19 = sbr.rel target = $region3
  $region8: #{merge_model_v_forward.1} parent=0 // loop_exit
    _
  %608 = vsyncmov [#allocation3]
  %s609 = vpop.sfrf %608
  %p610 = scmp.eq.s32.totalorder %s609, 0
  %p611 = pneg %p610
  %613 = shalt.err (%p611)
  %s614 = scalar_lea.sflag [#allocation3], 1
  %615 = vsyncmov %s614
  %s616 = vpop.sfrf %615
  %p617 = scmp.eq.s32.totalorder %s616, 0
  %p618 = pneg %p617
  %620 = shalt.err (%p618)
  %s621 = scalar_lea.sflag [#allocation3], 2
  %622 = vsyncmov %s621
  %s623 = vpop.sfrf %622
  %p624 = scmp.eq.s32.totalorder %s623, 0
  %p625 = pneg %p624
  %627 = shalt.err (%p625)
  %s628 = scalar_lea.sflag [#allocation3], 3
  %629 = vsyncmov %s628
  %s630 = vpop.sfrf %629
  %p631 = scmp.eq.s32.totalorder %s630, 0
  %p632 = pneg %p631
  %634 = shalt.err (%p632)
  %s635 = scalar_lea.sflag [#allocation3], 4
  %636 = vsyncmov %s635
  %s637 = vpop.sfrf %636
  %p638 = scmp.eq.s32.totalorder %s637, 0
  %p639 = pneg %p638
  %641 = shalt.err (%p639)
  %s642 = scalar_lea.sflag [#allocation3], 5
  %643 = vsyncmov %s642
  %s644 = vpop.sfrf %643
  %p645 = scmp.eq.s32.totalorder %s644, 0
  %p646 = pneg %p645
  %648 = shalt.err (%p646)
  %s649 = scalar_lea.sflag [#allocation3], 6
  %650 = vsyncmov %s649
  %s651 = vpop.sfrf %650
  %p652 = scmp.eq.s32.totalorder %s651, 0
  %p653 = pneg %p652
  %655 = shalt.err (%p653)
  %s656 = scalar_lea.sflag [#allocation3], 7
  %657 = vsyncmov %s656
  %s658 = vpop.sfrf %657
  %p659 = scmp.eq.s32.totalorder %s658, 0
  %p660 = pneg %p659
  %662 = shalt.err (%p660)

</llo_original>
